<compile_context>
chip_gen: v5e
topology: v5e:2x2
jax: 0.10.0
libtpu: 0.0.40
codegen_flags: <defaults>
</compile_context>

<pallas_src>
import functools

import jax
import jax.numpy as jnp
from jax import lax
from jax.experimental import pallas as pl
from jax.experimental.pallas import tpu as pltpu


def _round_up(n, m):
    return (n + m - 1) // m * m


def _fcu_down_kernel(x_ref, w_ref, p_ref, o_ref, *, n_valid, eps):
    # x_ref: (TM, Cin)   w_ref: (Cin, Cp)
    # p_ref: (4, Cp)  rows = [conv_bias, ln_gamma, ln_beta, valid-lane mask]
    # o_ref: (TM, Cp)
    x = x_ref[...]
    w = w_ref[...]
    if x.dtype != w.dtype:               # optional bf16 MXU inputs (v6e/v7x)
        x = x.astype(w.dtype)
    p = p_ref[...]
    b, g, bt, mask = p[0:1, :], p[1:2, :], p[2:3, :], p[3:4, :]

    # 1x1 conv == matmul over channels; always accumulate in f32 on the MXU.
    h = jnp.dot(x, w, preferred_element_type=jnp.float32) + b

    # Lane-padding columns (>= n_valid) carry zero weight/bias, so h is exactly
    # 0 there; they only need masking out of the variance (post mean-subtract).
    inv_n = jnp.float32(1.0 / n_valid)
    mean = jnp.sum(h, axis=-1, keepdims=True) * inv_n        # pad cols add 0
    centered = (h - mean) * mask
    var = jnp.sum(centered * centered, axis=-1, keepdims=True) * inv_n
    inv_std = lax.rsqrt(var + jnp.float32(eps))              # EUP, f32
    y = centered * (inv_std * g) + bt                        # pad cols -> 0
    o_ref[...] = jnp.maximum(y, jnp.float32(0.0)).astype(o_ref.dtype)   # ReLU


def fcu_down_forward(x, conv_w, conv_b, ln_gamma, ln_beta, dw_stride,
                     *, tile_m=512, matmul_dtype=None):
    """FCUDown forward.

    x:        (B, C_in, H, W) NCHW float32
    conv_w:   (C_out, C_in) or (C_out, C_in, 1, 1)  -- 1x1 conv weight
    conv_b, ln_gamma, ln_beta: (C_out,)
    returns:  (B, (H//dw_stride)*(W//dw_stride), C_out)
    """
    if conv_w.ndim == 4:
        conv_w = conv_w[:, :, 0, 0]
    B, Cin, H, W = x.shape
    Cout = conv_w.shape[0]
    s = dw_stride
    Hp, Wp = H // s, W // s
    M = B * Hp * Wp

    # --- avg-pool (commutes with the 1x1 conv) + NCHW -> (M, C_in) layout ---
    xp = x[:, :, :Hp * s, :Wp * s].reshape(B, Cin, Hp, s, Wp, s).mean(axis=(3, 5))
    x2 = xp.transpose(0, 2, 3, 1).reshape(M, Cin).astype(jnp.float32)

    # --- lane-dense / tile-aligned padding ----------------------------------
    Cp = _round_up(Cout, 128)                 # lane-dense weights + output
    TM = min(tile_m, _round_up(M, 8))         # rows per grid step (mult. of 8)
    Mp = _round_up(M, TM)                     # pad M so every tile is full

    x2 = jnp.pad(x2, ((0, Mp - M), (0, 0)))
    wt = jnp.pad(conv_w.T.astype(jnp.float32), ((0, 0), (0, Cp - Cout)))
    if matmul_dtype is not None:              # e.g. jnp.bfloat16 on v6e/v7x
        wt = wt.astype(matmul_dtype)
        x2 = x2.astype(matmul_dtype)

    pad = Cp - Cout
    params = jnp.stack([                      # (4, Cp) resident parameter slab
        jnp.pad(conv_b.astype(jnp.float32), (0, pad)),
        jnp.pad(ln_gamma.astype(jnp.float32), (0, pad)),
        jnp.pad(ln_beta.astype(jnp.float32), (0, pad)),
        jnp.pad(jnp.ones((Cout,), jnp.float32), (0, pad)),   # valid-lane mask
    ])

    kernel = functools.partial(_fcu_down_kernel, n_valid=Cout, eps=1e-6)

    cost = pl.CostEstimate(
        flops=int(2 * Mp * Cin * Cp + 10 * Mp * Cp),
        transcendentals=int(Mp),
        bytes_accessed=int(4 * (Mp * Cin + Cin * Cp + 4 * Cp + Mp * Cp)),
    )

    # VMEM budget: 2*(TM*Cin + TM*Cp)*4B + (Cin*Cp + 4*Cp)*4B -- small for the
    # default TM, well inside the 32 MiB scoped default on every generation.
    out = pl.pallas_call(
        kernel,
        out_shape=jax.ShapeDtypeStruct((Mp, Cp), jnp.float32),
        grid=(Mp // TM,),
        in_specs=[
            pl.BlockSpec((TM, Cin), lambda i: (i, 0)),   # activations: pipelined
            pl.BlockSpec((Cin, Cp), lambda i: (0, 0)),   # weights: resident
            pl.BlockSpec((4, Cp), lambda i: (0, 0)),     # bias/gamma/beta/mask
        ],
        out_specs=pl.BlockSpec((TM, Cp), lambda i: (i, 0)),
        compiler_params=pltpu.CompilerParams(
            dimension_semantics=("parallel",),           # megacore-shardable
        ),
        cost_estimate=cost,
    )(x2, wt, params)

    return out[:M, :Cout].reshape(B, Hp * Wp, Cout)


def init_params(key, inplanes, outplanes, dtype=jnp.float32):
    """Deterministic init mimicking nn.Conv2d/LayerNorm defaults."""
    k1, k2 = jax.random.split(key)
    bound = 1.0 / (inplanes ** 0.5)          # conv fan_in = C_in * 1 * 1
    conv_w = jax.random.uniform(k1, (outplanes, inplanes), dtype, -bound, bound)
    conv_b = jax.random.uniform(k2, (outplanes,), dtype, -bound, bound)
    ln_gamma = jnp.ones((outplanes,), dtype)
    ln_beta = jnp.zeros((outplanes,), dtype)
    return conv_w, conv_b, ln_gamma, ln_beta


def _reference(x, conv_w, conv_b, ln_gamma, ln_beta, s, eps=1e-6):
    """Plain-JAX port of the PyTorch forward, same op order as the module."""
    B, Cin, H, W = x.shape
    Cout = conv_w.shape[0]
    y = jnp.einsum("bchw,oc->bohw", x, conv_w) + conv_b[None, :, None, None]
    Hp, Wp = H // s, W // s
    y = y[:, :, :Hp * s, :Wp * s].reshape(B, Cout, Hp, s, Wp, s).mean(axis=(3, 5))
    y = y.reshape(B, Cout, Hp * Wp).transpose(0, 2, 1)       # (B, N, Cout)
    mean = y.mean(-1, keepdims=True)
    var = ((y - mean) ** 2).mean(-1, keepdims=True)
    y = (y - mean) / jnp.sqrt(var + eps) * ln_gamma + ln_beta
    return jnp.maximum(y, 0.0)


if __name__ == "__main__":
    key = jax.random.PRNGKey(0)
    kx, kp = jax.random.split(key)

    B, inplanes, H, W = 2, 16, 32, 32
    outplanes, dw_stride = 48, 4

    x = jax.random.normal(kx, (B, inplanes, H, W), jnp.float32)
    conv_w, conv_b, ln_gamma, ln_beta = init_params(kp, inplanes, outplanes)

    # tile_m=64 so even this small test exercises the multi-tile pipelined path.
    y = fcu_down_forward(x, conv_w, conv_b, ln_gamma, ln_beta, dw_stride, tile_m=64)
    y = jax.block_until_ready(y)

    n_patches = (H // dw_stride) * (W // dw_stride)
    assert y.shape == (B, n_patches, outplanes)

    ref = _reference(x, conv_w, conv_b, ln_gamma, ln_beta, dw_stride)
    assert jnp.allclose(y, ref, atol=1e-5, rtol=1e-5), float(jnp.max(jnp.abs(y - ref)))

    print("KERNEL_OK")
</pallas_src>

<mosaic_0001>
module attributes {stable_mosaic.version = 11 : i64} {
  func.func @_fcu_down_kernel(%arg0: i32, %arg1: memref<64x16xf32, #tpu.memory_space<vmem>>, %arg2: memref<16x128xf32, #tpu.memory_space<vmem>>, %arg3: memref<4x128xf32, #tpu.memory_space<vmem>>, %arg4: memref<64x128xf32, #tpu.memory_space<vmem>>) attributes {dimension_semantics = [#tpu.dimension_semantics<parallel>], iteration_bounds = array<i64: 2>, scalar_prefetch = 0 : i64, scratch_operands = 0 : i64, tpu.core_type = #tpu.core_type<tc>, window_params = [{transform_indices = @transform_0, window_bounds = array<i64: 64, 16>}, {pipeline_mode = #tpu.pipeline_mode<synchronous>, transform_indices = @transform_1, window_bounds = array<i64: 16, 128>}, {pipeline_mode = #tpu.pipeline_mode<synchronous>, transform_indices = @transform_2, window_bounds = array<i64: 4, 128>}, {transform_indices = @transform_3, window_bounds = array<i64: 64, 128>}]} {
    %c0 = arith.constant 0 : index
    %c0_0 = arith.constant 0 : index
    %0 = vector.load %arg1[%c0, %c0_0] : memref<64x16xf32, #tpu.memory_space<vmem>>, vector<64x16xf32>
    %c0_1 = arith.constant 0 : index
    %c0_2 = arith.constant 0 : index
    %1 = vector.load %arg2[%c0_1, %c0_2] : memref<16x128xf32, #tpu.memory_space<vmem>>, vector<16x128xf32>
    %c0_3 = arith.constant 0 : index
    %c0_4 = arith.constant 0 : index
    %2 = vector.load %arg3[%c0_3, %c0_4] : memref<4x128xf32, #tpu.memory_space<vmem>>, vector<4x128xf32>
    %3 = vector.extract_strided_slice %2 {offsets = [0, 0], sizes = [1, 128], strides = [1, 1]} : vector<4x128xf32> to vector<1x128xf32>
    %4 = vector.extract_strided_slice %2 {offsets = [1, 0], sizes = [1, 128], strides = [1, 1]} : vector<4x128xf32> to vector<1x128xf32>
    %5 = vector.extract_strided_slice %2 {offsets = [2, 0], sizes = [1, 128], strides = [1, 1]} : vector<4x128xf32> to vector<1x128xf32>
    %6 = vector.extract_strided_slice %2 {offsets = [3, 0], sizes = [1, 128], strides = [1, 1]} : vector<4x128xf32> to vector<1x128xf32>
    %cst = arith.constant dense<0.000000e+00> : vector<64x128xf32>
    %7 = tpu.matmul %0, %1, %cst {dimension_numbers = #tpu.dot_dimension_numbers<[1], [0], [0], [1], [0, 0, 1, 1], [], []>} : vector<64x16xf32>, vector<16x128xf32>, vector<64x128xf32> -> vector<64x128xf32>
    %8 = vector.broadcast %3 : vector<1x128xf32> to vector<64x128xf32>
    %9 = arith.addf %7, %8 : vector<64x128xf32>
    %cst_5 = arith.constant dense<0.000000e+00> : vector<64xf32>
    %10 = vector.multi_reduction <add>, %9, %cst_5 [1] : vector<64x128xf32> to vector<64xf32>
    %11 = vector.shape_cast %10 : vector<64xf32> to vector<64x1xf32>
    %cst_6 = arith.constant 0.020833334 : f32
    %12 = vector.broadcast %cst_6 : f32 to vector<64x1xf32>
    %13 = arith.mulf %11, %12 : vector<64x1xf32>
    %14 = vector.broadcast %13 : vector<64x1xf32> to vector<64x128xf32>
    %15 = arith.subf %9, %14 : vector<64x128xf32>
    %16 = vector.broadcast %6 : vector<1x128xf32> to vector<64x128xf32>
    %17 = arith.mulf %15, %16 : vector<64x128xf32>
    %18 = arith.mulf %17, %17 : vector<64x128xf32>
    %cst_7 = arith.constant dense<0.000000e+00> : vector<64xf32>
    %19 = vector.multi_reduction <add>, %18, %cst_7 [1] : vector<64x128xf32> to vector<64xf32>
    %20 = vector.shape_cast %19 : vector<64xf32> to vector<64x1xf32>
    %cst_8 = arith.constant 0.020833334 : f32
    %21 = vector.broadcast %cst_8 : f32 to vector<64x1xf32>
    %22 = arith.mulf %20, %21 : vector<64x1xf32>
    %cst_9 = arith.constant 9.99999997E-7 : f32
    %23 = vector.broadcast %cst_9 : f32 to vector<64x1xf32>
    %24 = arith.addf %22, %23 : vector<64x1xf32>
    %25 = math.rsqrt %24 : vector<64x1xf32>
    %26 = vector.broadcast %25 : vector<64x1xf32> to vector<64x128xf32>
    %27 = vector.broadcast %4 : vector<1x128xf32> to vector<64x128xf32>
    %28 = arith.mulf %26, %27 : vector<64x128xf32>
    %29 = arith.mulf %17, %28 : vector<64x128xf32>
    %30 = vector.broadcast %5 : vector<1x128xf32> to vector<64x128xf32>
    %31 = arith.addf %29, %30 : vector<64x128xf32>
    %cst_10 = arith.constant 0.000000e+00 : f32
    %32 = vector.broadcast %cst_10 : f32 to vector<64x128xf32>
    %33 = arith.maximumf %31, %32 : vector<64x128xf32>
    %c0_11 = arith.constant 0 : index
    %c0_12 = arith.constant 0 : index
    %34 = vector.load %arg4[%c0_11, %c0_12] : memref<64x128xf32, #tpu.memory_space<vmem>>, vector<64x128xf32>
    tpu.vector_store %arg4[%c0_11, %c0_12], %33 {strides = array<i32>} : memref<64x128xf32, #tpu.memory_space<vmem>>, vector<64x128xf32>,
    return
  }
  func.func @transform_0(%arg0: i32) -> (i32, i32) {
    %c0_i32 = arith.constant 0 : i32
    %c0_i32_0 = arith.constant 0 : i32
    return %arg0, %c0_i32 : i32, i32
  }
  func.func @transform_1(%arg0: i32) -> (i32, i32) {
    %c0_i32 = arith.constant 0 : i32
    %c0_i32_0 = arith.constant 0 : i32
    %c0_i32_1 = arith.constant 0 : i32
    return %c0_i32, %c0_i32_0 : i32, i32
  }
  func.func @transform_2(%arg0: i32) -> (i32, i32) {
    %c0_i32 = arith.constant 0 : i32
    %c0_i32_0 = arith.constant 0 : i32
    %c0_i32_1 = arith.constant 0 : i32
    return %c0_i32, %c0_i32_0 : i32, i32
  }
  func.func @transform_3(%arg0: i32) -> (i32, i32) {
    %c0_i32 = arith.constant 0 : i32
    %c0_i32_0 = arith.constant 0 : i32
    return %arg0, %c0_i32 : i32, i32
  }
}

</mosaic_0001>

<llo_original>
// kernel: tpu_custom_call.1
$region0: #{tpu_custom_call.1}
  #allocation0 [shape = 'u32[]', space=smem, size = 0x4, offset = 0x4, fixed_abs, tag = 'smem constant byte address 0x4 - core index']
  #allocation1 [shape = 'u32[72,128]{1,0:T(1,128)}', space=vmem, size = 0x9000, scoped, tag = 'internal scratch']
  %s0 = inlined_call_operand.vmem [shape: f32[128,16], index: 0, kind: input, shape index: {}]
  %s1 = inlined_call_operand.vmem [shape: f32[16,128], index: 1, kind: input, shape index: {}]
  %s2 = inlined_call_operand.vmem [shape: f32[4,128], index: 2, kind: input, shape index: {}]
  %s3 = inlined_call_operand.hbm [shape: f32[128,128], index: 3, kind: output, shape index: {}]
  %s4 = sld [smem:[#allocation0]]
  $region45: #{tpu_custom_call.1} parent=0
    _
  %s6 = ssub.s32 1, %s4
  %s7 = scalar_select 0, %s6, %s4
  $region1: #{tpu_custom_call.1} parent=0
    #allocation2 [shape = 'u8[65536]{0}', space=vmem, size = 0x10000, scoped, tag = 'output window, operand 0']
    #allocation3 [shape = 's32[2]{0}', space=sflag, size = 0x8, scoped, tag = 'scoped memory for tpu_custom_call.1']
    %8 = vsyncpa [#allocation3], 0
    %s9 = scalar_lea.sflag [#allocation3], 1
    %10 = vsyncpa %s9, 0
    loop: start=0, step=1, limit=4
    $region2: #{tpu_custom_call.1} parent=1 // loop_pre_header
      _
    $region3: #{tpu_custom_call.1} parent=1 // loop_header
      %s12 = sphi 0, %s16
      %p13 = scmp.ge.s32.totalorder %s12, 4
      %s22 = sphi 0, %s24
      %s25 = sphi 0, %s22
      %s26 = sphi 0, %s25
      %s42 = sphi 0, %s26
      %s46 = sphi 0, %s46
      %s48 = sphi 0, %s46
      %s49 = sphi 0, %s48
      %s63 = sphi 0, %s49
      %s67 = sphi 0, %s67
      %s69 = sphi 0, %s67
      %s70 = sphi 0, %s69
      %s84 = sphi 0, %s70
      %s90 = sphi 0, %s92
      %s93 = sphi 0, %s90
      %s94 = sphi 0, %s93
      %s110 = sphi 0, %s94
    $region4: #{tpu_custom_call.1} parent=1 // loop_header_branch
      %15 = sbr.rel (%p13) target = $region8
    $region5: #{tpu_custom_call.1} parent=1 // loop_body
      %s17 = ssub.s32 %s12, 1
      %s18 = ssub.s32 %s12, 2
      %s19 = sadd.s32 %s12, 1
      %s20 = ssub.s32 %s12, %s19
      %p21 = scmp.eq.s32.totalorder %s20, 0
      %s23 = sadd.s32 %s22, 1
      %s24 = scalar_select %p21, %s22, %s23
      %p27 = pneg %p21
      %p28 = scmp.eq.s32.totalorder %s12, 1
      %p29 = por %p27, %p28
      %p30 = scmp.ne.s32.totalorder %s22, %s25
      %p31 = scmp.eq.s32.totalorder %s12, 0
      %p32 = por %p30, %p31
      %p33 = scmp.ne.s32.totalorder %s22, %s25
      %p34 = scmp.eq.s32.totalorder %s17, 1
      %p35 = por %p33, %p34
      %p36 = scmp.ne.s32.totalorder %s25, %s26
      %p37 = scmp.eq.s32.totalorder %s17, 0
      %p38 = por %p36, %p37
      %p39 = scmp.ne.s32.totalorder %s25, %s26
      %p40 = scmp.eq.s32.totalorder %s18, 1
      %p41 = por %p39, %p40
      %p43 = scmp.ne.s32.totalorder %s26, %s42
      %p44 = scmp.eq.s32.totalorder %s18, 0
      %p45 = por %p43, %p44
      %s47 = sadd.s32 %s46, 1
      %p50 = scmp.eq.s32.totalorder %s12, 1
      %p51 = scmp.ne.s32.totalorder %s46, %s48
      %p52 = scmp.eq.s32.totalorder %s12, 0
      %p53 = por %p51, %p52
      %p54 = scmp.ne.s32.totalorder %s46, %s48
      %p55 = scmp.eq.s32.totalorder %s17, 1
      %p56 = por %p54, %p55
      %p57 = scmp.ne.s32.totalorder %s48, %s49
      %p58 = scmp.eq.s32.totalorder %s17, 0
      %p59 = por %p57, %p58
      %p60 = scmp.ne.s32.totalorder %s48, %s49
      %p61 = scmp.eq.s32.totalorder %s18, 1
      %p62 = por %p60, %p61
      %p64 = scmp.ne.s32.totalorder %s49, %s63
      %p65 = scmp.eq.s32.totalorder %s18, 0
      %p66 = por %p64, %p65
      %s68 = sadd.s32 %s67, 1
      %p71 = scmp.eq.s32.totalorder %s12, 1
      %p72 = scmp.ne.s32.totalorder %s67, %s69
      %p73 = scmp.eq.s32.totalorder %s12, 0
      %p74 = por %p72, %p73
      %p75 = scmp.ne.s32.totalorder %s67, %s69
      %p76 = scmp.eq.s32.totalorder %s17, 1
      %p77 = por %p75, %p76
      %p78 = scmp.ne.s32.totalorder %s69, %s70
      %p79 = scmp.eq.s32.totalorder %s17, 0
      %p80 = por %p78, %p79
      %p81 = scmp.ne.s32.totalorder %s69, %s70
      %p82 = scmp.eq.s32.totalorder %s18, 1
      %p83 = por %p81, %p82
      %p85 = scmp.ne.s32.totalorder %s70, %s84
      %p86 = scmp.eq.s32.totalorder %s18, 0
      %p87 = por %p85, %p86
      %s88 = ssub.s32 %s12, %s19
      %p89 = scmp.eq.s32.totalorder %s88, 0
      %s91 = sadd.s32 %s90, 1
      %s92 = scalar_select %p89, %s90, %s91
      %p95 = pneg %p89
      %p96 = scmp.eq.s32.totalorder %s12, 1
      %p97 = por %p95, %p96
      %p98 = scmp.ne.s32.totalorder %s90, %s93
      %p99 = scmp.eq.s32.totalorder %s12, 0
      %p100 = por %p98, %p99
      %p101 = scmp.ne.s32.totalorder %s90, %s93
      %p102 = scmp.eq.s32.totalorder %s17, 1
      %p103 = por %p101, %p102
      %p104 = scmp.ne.s32.totalorder %s93, %s94
      %p105 = scmp.eq.s32.totalorder %s17, 0
      %p106 = por %p104, %p105
      %p107 = scmp.ne.s32.totalorder %s93, %s94
      %p108 = scmp.eq.s32.totalorder %s18, 1
      %p109 = por %p107, %p108
      %p111 = scmp.ne.s32.totalorder %s94, %s110
      %p112 = scmp.eq.s32.totalorder %s18, 0
      %p113 = por %p111, %p112
      %p114 = scmp.le.s32.totalorder 1, %s12
      %p115 = scmp.lt.s32.totalorder %s12, 3
      %p116 = pnand %p114, %p115
      %p117 = pneg %p116
      // Predicated region
      $region9: #{tpu_custom_call.1} parent=5 // pred_check
        _
      $region10: #{tpu_custom_call.1} parent=5 // pred_check_branch
        %119 = sbr.rel (%p116) target = $region12
      $region11: #{tpu_custom_call.1} parent=5 // pred_region
        %s120 = ssub.s32 %s12, 1
        // Predicated region
        $region13: #{tpu_custom_call.1} parent=11 // pred_check
          %p121 = pneg %p59
        $region14: #{tpu_custom_call.1} parent=11 // pred_check_branch
          %123 = sbr.rel (%p121) target = $region16
        $region15: #{tpu_custom_call.1} parent=11 // pred_region
          _
        $region16: #{tpu_custom_call.1} parent=11 // pred_fallthru
          _
        // Predicated region
        $region17: #{tpu_custom_call.1} parent=11 // pred_check
          %p124 = pneg %p80
        $region18: #{tpu_custom_call.1} parent=11 // pred_check_branch
          %126 = sbr.rel (%p124) target = $region20
        $region19: #{tpu_custom_call.1} parent=11 // pred_region
          _
        $region20: #{tpu_custom_call.1} parent=11 // pred_fallthru
          _
      $region12: #{tpu_custom_call.1} parent=5 // pred_fallthru
        _
      %p127 = scmp.lt.s32.totalorder %s12, 2
      // Predicated region
      $region21: #{tpu_custom_call.1} parent=5 // pred_check
        %p128 = pneg %p127
      $region22: #{tpu_custom_call.1} parent=5 // pred_check_branch
        %130 = sbr.rel (%p128) target = $region24
      $region23: #{tpu_custom_call.1} parent=5 // pred_region
        // Predicated region
        $region25: #{tpu_custom_call.1} parent=23 // pred_check
          %p131 = pneg %p32
        $region26: #{tpu_custom_call.1} parent=23 // pred_check_branch
          %133 = sbr.rel (%p131) target = $region28
        $region27: #{tpu_custom_call.1} parent=23 // pred_region
          %s134 = smul.u32 8, %s12
          %p135 = scmp.lt.s32.totalorder %s134, 15
          %s136 = scalar_select %p135, %s134, 15
          %s137 = smul.addr %s136, 8
          %s138 = scalar_lea.vmem %s0, %s137
          %s139 = smul.u32 8, %s12
        $region28: #{tpu_custom_call.1} parent=23 // pred_fallthru
          _
      $region24: #{tpu_custom_call.1} parent=5 // pred_fallthru
        _
      %p140 = scmp.le.s32.totalorder 1, %s12
      %p141 = scmp.lt.s32.totalorder %s12, 3
      %p142 = pnand %p140, %p141
      %p143 = pneg %p142
      // Predicated region
      $region29: #{tpu_custom_call.1} parent=5 // pred_check
        _
      $region30: #{tpu_custom_call.1} parent=5 // pred_check_branch
        %145 = sbr.rel (%p142) target = $region32
      $region31: #{tpu_custom_call.1} parent=5 // pred_region
        %s146 = ssub.s32 %s12, 1
        %s147 = smul.u32 8, %s17
        %p148 = scmp.lt.s32.totalorder %s147, 15
        %s149 = scalar_select %p148, %s147, 15
        %s150 = smul.addr %s149, 8
        %s151 = scalar_lea.vmem %s0, %s150
        %p152 = pneg %p38
        %p153 = pneg %p35
        %p154 = pneg %p59
        %p155 = pneg %p56
        %p156 = pneg %p80
        %p157 = pneg %p77
        %p158 = pneg %p106
        %p159 = pneg %p103
        %s160 = sand.u32 %s93, 1
        %s161 = scalar_lea.sflag [#allocation3], %s160
        %s162 = sand.u32 %s93, 1
        %s163 = smul.addr %s162, 64
        %s164 = scalar_lea.vmem [#allocation2], %s163
        %s165 = smul.u32 8, %s17
        %p166 = scmp.lt.s32.totalorder %s165, 15
        %s167 = scalar_select %p166, %s165, 15
        %s168 = smul.addr %s167, 8
        %s169 = scalar_lea.vmem %s0, %s168
        %s170 = smul.u32 8, %s17
        %s171 = smul.u32 8, %s17
        %v172 = vld [vmem:[%s169] sm:$0xff]
        %v173 = vld [vmem:[%s169 + $0x8] sm:$0xff]
        %v174 = vld [vmem:[%s169 + $0x10] sm:$0xff]
        %v175 = vld [vmem:[%s169 + $0x18] sm:$0xff]
        %v176 = vld [vmem:[%s169 + $0x20] sm:$0xff]
        %v177 = vld [vmem:[%s169 + $0x28] sm:$0xff]
        %v178 = vld [vmem:[%s169 + $0x30] sm:$0xff]
        %v179 = vld [vmem:[%s169 + $0x38] sm:$0xff]
        %v180 = vld [vmem:[%s1] sm:$0xff]
        %v181 = vld [vmem:[%s1 + $0x8] sm:$0xff]
        %v182 = vld [vmem:[%s2] sm:$0xf]
        %v183 = vperm.slane %v182, 0
        %vm184 = vcmask 130048
        %v186 = vsel %vm184, %v172, 0
        %v189 = vsel %vm184, %v173, 0
        %v192 = vsel %vm184, %v174, 0
        %v195 = vsel %vm184, %v175, 0
        %v198 = vsel %vm184, %v176, 0
        %v201 = vsel %vm184, %v177, 0
        %v204 = vsel %vm184, %v178, 0
        %v207 = vsel %vm184, %v179, 0
        %209 = vmatpush.msra.mxu0 0.0
        %210 = vmatpush.msra.mxu0 0.0
        %211 = vmatpush.msra.mxu0 0.0
        %212 = vmatpush.msra.mxu0 0.0
        %213 = vmatpush.msra.mxu0 0.0
        %214 = vmatpush.msra.mxu0 0.0
        %215 = vmatpush.msra.mxu0 0.0
        %216 = vmatpush.msra.mxu0 0.0
        %217 = vmatpush.msra.mxu0 0.0
        %218 = vmatpush.msra.mxu0 0.0
        %219 = vmatpush.msra.mxu0 0.0
        %220 = vmatpush.msra.mxu0 0.0
        %221 = vmatpush.msra.mxu0 0.0
        %222 = vmatpush.msra.mxu0 0.0
        %223 = vmatpush.msra.mxu0 %v181
        %224 = vmatpush.msra.mxu0 %v180
        %225 = vmatmul.f32.gmra.mxu0 %v186
        %v226 = vpop.f32.mrf.mxu0
        %v227 = vadd.f32 %v183, %v226
        %228 = vmatmul.f32.gmra.mxu0 %v189
        %v229 = vpop.f32.mrf.mxu0
        %v230 = vadd.f32 %v183, %v229
        %231 = vmatmul.f32.gmra.mxu0 %v192
        %v232 = vpop.f32.mrf.mxu0
        %v233 = vadd.f32 %v183, %v232
        %234 = vmatmul.f32.gmra.mxu0 %v195
        %v235 = vpop.f32.mrf.mxu0
        %v236 = vadd.f32 %v183, %v235
        %237 = vmatmul.f32.gmra.mxu0 %v198
        %v238 = vpop.f32.mrf.mxu0
        %v239 = vadd.f32 %v183, %v238
        %240 = vmatmul.f32.gmra.mxu0 %v201
        %v241 = vpop.f32.mrf.mxu0
        %v242 = vadd.f32 %v183, %v241
        %243 = vmatmul.f32.gmra.mxu0 %v204
        %v244 = vpop.f32.mrf.mxu0
        %v245 = vadd.f32 %v183, %v244
        %246 = vmatmul.f32.gmra.mxu0 %v207
        %v247 = vpop.f32.mrf.mxu0
        %v248 = vadd.f32 %v183, %v247
        %249 = vdwg.mxu0
        %250 = vadd.xlane.f32.xlu0 %v227
        %v251 = vpop.xlane.xlu0 %250
        %252 = vadd.xlane.f32.xlu0 %v230
        %v253 = vpop.xlane.xlu0 %252
        %254 = vadd.xlane.f32.xlu0 %v233
        %v255 = vpop.xlane.xlu0 %254
        %256 = vadd.xlane.f32.xlu0 %v236
        %v257 = vpop.xlane.xlu0 %256
        %258 = vadd.xlane.f32.xlu0 %v239
        %v259 = vpop.xlane.xlu0 %258
        %260 = vadd.xlane.f32.xlu0 %v242
        %v261 = vpop.xlane.xlu0 %260
        %262 = vadd.xlane.f32.xlu0 %v245
        %v263 = vpop.xlane.xlu0 %262
        %264 = vadd.xlane.f32.xlu0 %v248
        %v265 = vpop.xlane.xlu0 %264
        %v266 = vmul.f32 %v251, 0.020833334
        %v267 = vmul.f32 %v253, 0.020833334
        %v268 = vmul.f32 %v255, 0.020833334
        %v269 = vmul.f32 %v257, 0.020833334
        %v270 = vmul.f32 %v259, 0.020833334
        %v271 = vmul.f32 %v261, 0.020833334
        %v272 = vmul.f32 %v263, 0.020833334
        %v273 = vmul.f32 %v265, 0.020833334
        %v274 = vsub.f32 %v227, %v266
        %v275 = vsub.f32 %v230, %v267
        %v276 = vsub.f32 %v233, %v268
        %v277 = vsub.f32 %v236, %v269
        %v278 = vsub.f32 %v239, %v270
        %v279 = vsub.f32 %v242, %v271
        %v280 = vsub.f32 %v245, %v272
        %v281 = vsub.f32 %v248, %v273
        %v282 = vperm.slane %v182, 3
        %v283 = vmul.f32 %v274, %v282
        %v284 = vmul.f32 %v275, %v282
        %v285 = vmul.f32 %v276, %v282
        %v286 = vmul.f32 %v277, %v282
        %v287 = vmul.f32 %v278, %v282
        %v288 = vmul.f32 %v279, %v282
        %v289 = vmul.f32 %v280, %v282
        %v290 = vmul.f32 %v281, %v282
        %v291 = vmul.f32 %v283, %v283
        %v292 = vmul.f32 %v284, %v284
        %v293 = vmul.f32 %v285, %v285
        %v294 = vmul.f32 %v286, %v286
        %v295 = vmul.f32 %v287, %v287
        %v296 = vmul.f32 %v288, %v288
        %v297 = vmul.f32 %v289, %v289
        %v298 = vmul.f32 %v290, %v290
        %299 = vadd.xlane.f32.xlu0 %v291
        %v300 = vpop.xlane.xlu0 %299
        %301 = vadd.xlane.f32.xlu0 %v292
        %v302 = vpop.xlane.xlu0 %301
        %303 = vadd.xlane.f32.xlu0 %v293
        %v304 = vpop.xlane.xlu0 %303
        %305 = vadd.xlane.f32.xlu0 %v294
        %v306 = vpop.xlane.xlu0 %305
        %307 = vadd.xlane.f32.xlu0 %v295
        %v308 = vpop.xlane.xlu0 %307
        %309 = vadd.xlane.f32.xlu0 %v296
        %v310 = vpop.xlane.xlu0 %309
        %311 = vadd.xlane.f32.xlu0 %v297
        %v312 = vpop.xlane.xlu0 %311
        %313 = vadd.xlane.f32.xlu0 %v298
        %v314 = vpop.xlane.xlu0 %313
        %v315 = vmul.f32 %v300, 0.020833334
        %v316 = vmul.f32 %v302, 0.020833334
        %v317 = vmul.f32 %v304, 0.020833334
        %v318 = vmul.f32 %v306, 0.020833334
        %v319 = vmul.f32 %v308, 0.020833334
        %v320 = vmul.f32 %v310, 0.020833334
        %v321 = vmul.f32 %v312, 0.020833334
        %v322 = vmul.f32 %v314, 0.020833334
        %v323 = vadd.f32 %v315, 1e-06
        %v324 = vadd.f32 %v316, 1e-06
        %v325 = vadd.f32 %v317, 1e-06
        %v326 = vadd.f32 %v318, 1e-06
        %v327 = vadd.f32 %v319, 1e-06
        %v328 = vadd.f32 %v320, 1e-06
        %v329 = vadd.f32 %v321, 1e-06
        %v330 = vadd.f32 %v322, 1e-06
        %v331 = vrsqrt.pop %v323
        %v332 = vmul.f32 %v331, %v323
        %v333 = vmul.f32 %v332, %v331
        %v334 = vmul.f32 0.5, %v333
        %v335 = vsub.f32 1.5, %v334
        %v336 = vmul.f32 %v331, %v335
        %vm337 = vweird.f32 %v323
        %vm338 = vweird.f32 %v331
        %vm339 = vmor %vm337, %vm338
        %v340 = vsel %vm339, %v331, %v336
        %v341 = vrsqrt.pop %v324
        %v342 = vmul.f32 %v341, %v324
        %v343 = vmul.f32 %v342, %v341
        %v344 = vmul.f32 0.5, %v343
        %v345 = vsub.f32 1.5, %v344
        %v346 = vmul.f32 %v341, %v345
        %vm347 = vweird.f32 %v324
        %vm348 = vweird.f32 %v341
        %vm349 = vmor %vm347, %vm348
        %v350 = vsel %vm349, %v341, %v346
        %v351 = vrsqrt.pop %v325
        %v352 = vmul.f32 %v351, %v325
        %v353 = vmul.f32 %v352, %v351
        %v354 = vmul.f32 0.5, %v353
        %v355 = vsub.f32 1.5, %v354
        %v356 = vmul.f32 %v351, %v355
        %vm357 = vweird.f32 %v325
        %vm358 = vweird.f32 %v351
        %vm359 = vmor %vm357, %vm358
        %v360 = vsel %vm359, %v351, %v356
        %v361 = vrsqrt.pop %v326
        %v362 = vmul.f32 %v361, %v326
        %v363 = vmul.f32 %v362, %v361
        %v364 = vmul.f32 0.5, %v363
        %v365 = vsub.f32 1.5, %v364
        %v366 = vmul.f32 %v361, %v365
        %vm367 = vweird.f32 %v326
        %vm368 = vweird.f32 %v361
        %vm369 = vmor %vm367, %vm368
        %v370 = vsel %vm369, %v361, %v366
        %v371 = vrsqrt.pop %v327
        %v372 = vmul.f32 %v371, %v327
        %v373 = vmul.f32 %v372, %v371
        %v374 = vmul.f32 0.5, %v373
        %v375 = vsub.f32 1.5, %v374
        %v376 = vmul.f32 %v371, %v375
        %vm377 = vweird.f32 %v327
        %vm378 = vweird.f32 %v371
        %vm379 = vmor %vm377, %vm378
        %v380 = vsel %vm379, %v371, %v376
        %v381 = vrsqrt.pop %v328
        %v382 = vmul.f32 %v381, %v328
        %v383 = vmul.f32 %v382, %v381
        %v384 = vmul.f32 0.5, %v383
        %v385 = vsub.f32 1.5, %v384
        %v386 = vmul.f32 %v381, %v385
        %vm387 = vweird.f32 %v328
        %vm388 = vweird.f32 %v381
        %vm389 = vmor %vm387, %vm388
        %v390 = vsel %vm389, %v381, %v386
        %v391 = vrsqrt.pop %v329
        %v392 = vmul.f32 %v391, %v329
        %v393 = vmul.f32 %v392, %v391
        %v394 = vmul.f32 0.5, %v393
        %v395 = vsub.f32 1.5, %v394
        %v396 = vmul.f32 %v391, %v395
        %vm397 = vweird.f32 %v329
        %vm398 = vweird.f32 %v391
        %vm399 = vmor %vm397, %vm398
        %v400 = vsel %vm399, %v391, %v396
        %v401 = vrsqrt.pop %v330
        %v402 = vmul.f32 %v401, %v330
        %v403 = vmul.f32 %v402, %v401
        %v404 = vmul.f32 0.5, %v403
        %v405 = vsub.f32 1.5, %v404
        %v406 = vmul.f32 %v401, %v405
        %vm407 = vweird.f32 %v330
        %vm408 = vweird.f32 %v401
        %vm409 = vmor %vm407, %vm408
        %v410 = vsel %vm409, %v401, %v406
        %v411 = vperm.slane %v182, 1
        %v412 = vmul.f32 %v340, %v411
        %v413 = vmul.f32 %v350, %v411
        %v414 = vmul.f32 %v360, %v411
        %v415 = vmul.f32 %v370, %v411
        %v416 = vmul.f32 %v380, %v411
        %v417 = vmul.f32 %v390, %v411
        %v418 = vmul.f32 %v400, %v411
        %v419 = vmul.f32 %v410, %v411
        %v420 = vmul.f32 %v283, %v412
        %v421 = vmul.f32 %v284, %v413
        %v422 = vmul.f32 %v285, %v414
        %v423 = vmul.f32 %v286, %v415
        %v424 = vmul.f32 %v287, %v416
        %v425 = vmul.f32 %v288, %v417
        %v426 = vmul.f32 %v289, %v418
        %v427 = vmul.f32 %v290, %v419
        %v428 = vperm.slane %v182, 2
        %v429 = vadd.f32 %v420, %v428
        %v430 = vadd.f32 %v421, %v428
        %v431 = vadd.f32 %v422, %v428
        %v432 = vadd.f32 %v423, %v428
        %v433 = vadd.f32 %v424, %v428
        %v434 = vadd.f32 %v425, %v428
        %v435 = vadd.f32 %v426, %v428
        %v436 = vadd.f32 %v427, %v428
        %v437 = vmax.f32 %v429, 0.0
        %v438 = vmax.f32 %v430, 0.0
        %v439 = vmax.f32 %v431, 0.0
        %v440 = vmax.f32 %v432, 0.0
        %v441 = vmax.f32 %v433, 0.0
        %v442 = vmax.f32 %v434, 0.0
        %v443 = vmax.f32 %v435, 0.0
        %v444 = vmax.f32 %v436, 0.0
        %445 = vst [vmem:[%s164] sm:$0xff] %v437
        %446 = vst [vmem:[%s164 + $0x8] sm:$0xff] %v438
        %447 = vst [vmem:[%s164 + $0x10] sm:$0xff] %v439
        %448 = vst [vmem:[%s164 + $0x18] sm:$0xff] %v440
        %449 = vst [vmem:[%s164 + $0x20] sm:$0xff] %v441
        %450 = vst [vmem:[%s164 + $0x28] sm:$0xff] %v442
        %451 = vst [vmem:[%s164 + $0x30] sm:$0xff] %v443
        %452 = vst [vmem:[%s164 + $0x38] sm:$0xff] %v444
        %s453 = sand.u32 %s93, 1
        %s454 = scalar_lea.sflag [#allocation3], %s453
        %s455 = sand.u32 %s93, 1
        %s456 = smul.addr %s455, 64
        %s457 = scalar_lea.vmem [#allocation2], %s456
        // Predicated region
        $region33: #{tpu_custom_call.1} parent=31 // pred_check
          %p458 = pneg %p103
        $region34: #{tpu_custom_call.1} parent=31 // pred_check_branch
          %460 = sbr.rel (%p458) target = $region36
        $region35: #{tpu_custom_call.1} parent=31 // pred_region
          %s461 = smul.u32 8, %s17
          %463 = vsyncadd %s454, 0
          %s464 = smul.addr %s461, 8
          %s465 = scalar_lea.hbm %s3, %s464
          %s466 = sshll.u32 %s457, 4
          %s467 = int_to_ptr.vmem [resolvable:$true] %s466
          %s468 = sshll.u32 %s465, 4
          %s469 = int_to_ptr.hbm [resolvable:$true] %s468
          %474 = dma.vmem_to_hbm [thread:$0]  %s467, 1024, %s469, %s454, 128, 128, 8
        $region36: #{tpu_custom_call.1} parent=31 // pred_fallthru
          _
      $region32: #{tpu_custom_call.1} parent=5 // pred_fallthru
        _
      %p475 = scmp.le.s32.totalorder 2, %s12
      // Predicated region
      $region37: #{tpu_custom_call.1} parent=5 // pred_check
        %p476 = pneg %p475
      $region38: #{tpu_custom_call.1} parent=5 // pred_check_branch
        %478 = sbr.rel (%p476) target = $region40
      $region39: #{tpu_custom_call.1} parent=5 // pred_region
        %s479 = ssub.s32 %s12, 2
        // Predicated region
        $region41: #{tpu_custom_call.1} parent=39 // pred_check
          %p480 = pneg %p109
        $region42: #{tpu_custom_call.1} parent=39 // pred_check_branch
          %482 = sbr.rel (%p480) target = $region44
        $region43: #{tpu_custom_call.1} parent=39 // pred_region
          %s483 = sand.u32 %s94, 1
          %s484 = scalar_lea.sflag [#allocation3], %s483
          %s485 = sand.u32 %s94, 1
          %s486 = smul.addr %s485, 64
          %s487 = scalar_lea.vmem [#allocation2], %s486
          %489 = dma.done %s484, 1024
        $region44: #{tpu_custom_call.1} parent=39 // pred_fallthru
          _
      $region40: #{tpu_custom_call.1} parent=5 // pred_fallthru
        _
    $region6: #{tpu_custom_call.1} parent=1 // loop_footer
      %s16 = sadd.s32 1, %s12
    $region7: #{tpu_custom_call.1} parent=1 // loop_footer_branch
      %11 = sbr.rel target = $region3
    $region8: #{tpu_custom_call.1} parent=1 // loop_exit
      _
    %490 = vsyncpa [#allocation3], 1
    %s491 = scalar_lea.sflag [#allocation3], 1
    %492 = vsyncpa %s491, 1

</llo_original>
